<compile_context>
chip_gen: v5e
topology: v5e:2x2
jax: 0.10.0
libtpu: 0.0.40
codegen_flags: <defaults>
</compile_context>

<pallas_src>
import jax
import jax.numpy as jnp
from jax import lax
from jax.experimental import pallas as pl
from jax.experimental.pallas import tpu as pltpu


def _round_up(x, m):
    return (x + m - 1) // m * m


def _cdiv(a, b):
    return (a + b - 1) // b


# ----------------------------------------------------------------------------
# Pallas kernels: fused im2col-GEMM + (folded) BN shift + ReLU
# ----------------------------------------------------------------------------
def _gemm_bn_relu_kernel_single_k(a_ref, b_ref, shift_ref, o_ref):
    """Single K step (K fits one block): no accumulator round-trip.

    a_ref     : (TM, K)   bf16  im2col patches tile (BN scale folded into B)
    b_ref     : (K,  TN)  bf16  scale-folded weight tile
    shift_ref : (1,  TN)  f32   beta + (conv_bias - mean) * scale
    o_ref     : (TM, TN)  bf16  output tile
    """
    acc = jnp.dot(a_ref[...], b_ref[...], preferred_element_type=jnp.float32)
    o_ref[...] = jnp.maximum(acc + shift_ref[...], 0.0).astype(o_ref.dtype)


def _gemm_bn_relu_kernel_multi_k(a_ref, b_ref, shift_ref, o_ref, acc_ref):
    """K tiled on the last ('arbitrary') grid axis with an f32 VMEM accumulator."""
    k = pl.program_id(2)
    prod = jnp.dot(a_ref[...], b_ref[...], preferred_element_type=jnp.float32)

    @pl.when(k == 0)
    def _():
        acc_ref[...] = prod          # first step writes (no zero-init + RMW)

    @pl.when(k > 0)
    def _():
        acc_ref[...] += prod

    @pl.when(k == pl.num_programs(2) - 1)
    def _():
        y = acc_ref[...] + shift_ref[...]
        o_ref[...] = jnp.maximum(y, 0.0).astype(o_ref.dtype)


def _fused_gemm_bn_relu(a, b, shift, *, tm, tn, nk, tk, out_dtype=jnp.bfloat16):
    """a: (M, K_total) bf16, b: (K_total, Cout_pad) bf16, shift: (1, Cout_pad) f32."""
    M, K_total = a.shape
    _, Cout_pad = b.shape
    gm = _cdiv(M, tm)               # ragged last M tile is fine (K is exact)
    gn = Cout_pad // tn
    out_shape = jax.ShapeDtypeStruct((M, Cout_pad), out_dtype)

    if nk == 1:
        return pl.pallas_call(
            _gemm_bn_relu_kernel_single_k,
            out_shape=out_shape,
            grid_spec=pltpu.PrefetchScalarGridSpec(
                num_scalar_prefetch=0,
                grid=(gm, gn),
                in_specs=[
                    pl.BlockSpec((tm, K_total), lambda i, j: (i, 0)),
                    pl.BlockSpec((K_total, tn), lambda i, j: (0, j)),
                    pl.BlockSpec((1, tn), lambda i, j: (0, j)),
                ],
                out_specs=pl.BlockSpec((tm, tn), lambda i, j: (i, j)),
            ),
            compiler_params=pltpu.CompilerParams(
                dimension_semantics=("parallel", "parallel")),
        )(a, b, shift)

    return pl.pallas_call(
        _gemm_bn_relu_kernel_multi_k,
        out_shape=out_shape,
        grid_spec=pltpu.PrefetchScalarGridSpec(
            num_scalar_prefetch=0,
            grid=(gm, gn, nk),
            in_specs=[
                pl.BlockSpec((tm, tk), lambda i, j, k: (i, k)),
                pl.BlockSpec((tk, tn), lambda i, j, k: (k, j)),
                pl.BlockSpec((1, tn), lambda i, j, k: (0, j)),
            ],
            out_specs=pl.BlockSpec((tm, tn), lambda i, j, k: (i, j)),
            scratch_shapes=[pltpu.VMEM((tm, tn), jnp.float32)],
        ),
        compiler_params=pltpu.CompilerParams(
            dimension_semantics=("parallel", "parallel", "arbitrary")),
    )(a, b, shift)


# ----------------------------------------------------------------------------
# Wrapper glue (layout only): im2col patch extraction, channels-last
# ----------------------------------------------------------------------------
def _extract_patches(xp, kD, kH, kW, sd, sh, sw, Do, Ho, Wo, k_extra=0):
    """xp: (N, Dp, Hp, Wp, C) zero-padded, channels-last (already bf16).

    Returns (N*Do*Ho*Wo, kD*kH*kW*C + k_extra); feature index is tap-major then
    channel, matching the weight reshape. The optional k_extra zero chunk is
    appended inside the concat so no separate jnp.pad pass over A is needed.
    """
    N, Dp, Hp, Wp, C = xp.shape
    if (kD, kH, kW) == (1, 1, 1) and k_extra == 0:
        # Pointwise conv (how S3DG's Mixed_* blocks use BasicConv3d): a reshape.
        p = xp[:, ::sd, ::sh, ::sw, :][:, :Do, :Ho, :Wo, :]
        return p.reshape(N * Do * Ho * Wo, C)
    slices = []
    for kd in range(kD):
        for kh in range(kH):
            for kw in range(kW):
                s = lax.slice(
                    xp,
                    (0, kd, kh, kw, 0),
                    (N,
                     kd + sd * (Do - 1) + 1,
                     kh + sh * (Ho - 1) + 1,
                     kw + sw * (Wo - 1) + 1,
                     C),
                    (1, sd, sh, sw, 1))
                slices.append(s)
    if k_extra:
        slices.append(jnp.zeros((N, Do, Ho, Wo, k_extra), xp.dtype))
    patches = jnp.concatenate(slices, axis=-1)
    return patches.reshape(N * Do * Ho * Wo, kD * kH * kW * C + k_extra)


# ----------------------------------------------------------------------------
# BasicConv3d forward, channels-last (NDHWC) native
# ----------------------------------------------------------------------------
def basic_conv3d_ndhwc(x_ndhwc, weight_oidhw, bn_gamma, bn_beta, bn_mean, bn_var,
                       *, stride, padding, conv_bias=None, eps=1e-3,
                       tm=256, tn_max=256, max_tk=1024, out_dtype=jnp.bfloat16):
    N, D, H, W, C_in = x_ndhwc.shape
    C_out, C_in_w, kD, kH, kW = weight_oidhw.shape
    assert C_in_w == C_in, (C_in_w, C_in)
    sd, sh, sw = (stride,) * 3 if isinstance(stride, int) else tuple(stride)
    pd, ph, pw = (padding,) * 3 if isinstance(padding, int) else tuple(padding)

    D_out = (D + 2 * pd - kD) // sd + 1
    H_out = (H + 2 * ph - kH) // sh + 1
    W_out = (W + 2 * pw - kW) // sw + 1

    M = N * D_out * H_out * W_out
    K = kD * kH * kW * C_in

    # ---- K tiling: never pad the activation matrix unless K must be tiled ----
    if K <= max_tk:
        tk, nk, K_total = K, 1, K          # single full-extent K block
    else:
        nk = _cdiv(K, max_tk)
        tk = _round_up(_cdiv(K, nk), 128)
        while nk * tk < K:                 # defensive; shouldn't trigger
            nk += 1
            tk = _round_up(_cdiv(K, nk), 128)
        K_total = nk * tk
    k_extra = K_total - K

    # ---- layout glue (plain JAX, channels-last; cast to bf16 up front) ----
    x = x_ndhwc.astype(jnp.bfloat16)
    if pd or ph or pw:
        x = jnp.pad(x, ((0, 0), (pd, pd), (ph, ph), (pw, pw), (0, 0)))
    a = _extract_patches(x, kD, kH, kW, sd, sh, sw, D_out, H_out, W_out, k_extra)

    # ---- fold BN scale (and conv bias) into static per-channel constants ----
    scale = (bn_gamma / jnp.sqrt(bn_var + eps)).astype(jnp.float32)
    bias = jnp.zeros((C_out,), jnp.float32) if conv_bias is None \
        else conv_bias.astype(jnp.float32)
    shift = (bn_beta.astype(jnp.float32) + (bias - bn_mean) * scale)

    # (C_out, C_in, kD, kH, kW) -> (kD*kH*kW*C_in, C_out), tap-major, scale-folded.
    w2 = jnp.transpose(weight_oidhw, (2, 3, 4, 1, 0)).reshape(K, C_out)
    w2 = (w2.astype(jnp.float32) * scale[None, :]).astype(jnp.bfloat16)

    # ---- weight-side padding only (cheap, static) ----
    Cout_pad = _round_up(C_out, 128)
    tn = tn_max if Cout_pad % tn_max == 0 else 128
    tn = min(tn, Cout_pad)
    if Cout_pad != C_out or K_total != K:
        w2 = jnp.pad(w2, ((0, K_total - K), (0, Cout_pad - C_out)))
    shift_p = jnp.pad(shift, (0, Cout_pad - C_out)).reshape(1, Cout_pad)

    tm_eff = min(tm, _round_up(M, 16))

    out_mat = _fused_gemm_bn_relu(a, w2, shift_p, tm=tm_eff, tn=tn, nk=nk, tk=tk,
                                  out_dtype=out_dtype)

    if Cout_pad != C_out:
        out_mat = out_mat[:, :C_out]
    return out_mat.reshape(N, D_out, H_out, W_out, C_out)


# NCDHW-compatible wrapper (transpose only at the API boundary).
def basic_conv3d(x_ncdhw, weight_oidhw, bn_gamma, bn_beta, bn_mean, bn_var,
                 *, stride, padding, conv_bias=None, eps=1e-3, **tile_kwargs):
    x = jnp.transpose(x_ncdhw, (0, 2, 3, 4, 1))
    y = basic_conv3d_ndhwc(x, weight_oidhw, bn_gamma, bn_beta, bn_mean, bn_var,
                           stride=stride, padding=padding, conv_bias=conv_bias,
                           eps=eps, **tile_kwargs)
    return jnp.transpose(y, (0, 4, 1, 2, 3))


# ----------------------------------------------------------------------------
# STConv3d: (1,k,k) conv(+bias)+BN+ReLU then (k,1,1) conv(+bias)+BN+ReLU.
# The intermediate stays channels-last / bf16 — no transposes between layers.
# ----------------------------------------------------------------------------
def st_conv3d_ndhwc(x_ndhwc, w_spatial, bn_spatial, w_temporal, bn_temporal,
                    *, stride, padding, b_spatial=None, b_temporal=None,
                    eps=1e-3, **tile_kwargs):
    gs, bs, ms, vs = bn_spatial
    gt, bt, mt, vt = bn_temporal
    y = basic_conv3d_ndhwc(x_ndhwc, w_spatial, gs, bs, ms, vs,
                           stride=(1, stride, stride), padding=(0, padding, padding),
                           conv_bias=b_spatial, eps=eps, **tile_kwargs)
    return basic_conv3d_ndhwc(y, w_temporal, gt, bt, mt, vt,
                              stride=(stride, 1, 1), padding=(padding, 0, 0),
                              conv_bias=b_temporal, eps=eps, **tile_kwargs)


def st_conv3d(x_ncdhw, w_spatial, bn_spatial, w_temporal, bn_temporal,
              *, stride, padding, b_spatial=None, b_temporal=None,
              eps=1e-3, **tile_kwargs):
    x = jnp.transpose(x_ncdhw, (0, 2, 3, 4, 1))
    y = st_conv3d_ndhwc(x, w_spatial, bn_spatial, w_temporal, bn_temporal,
                        stride=stride, padding=padding,
                        b_spatial=b_spatial, b_temporal=b_temporal,
                        eps=eps, **tile_kwargs)
    return jnp.transpose(y, (0, 4, 1, 2, 3))


# ----------------------------------------------------------------------------
# Pure-JAX reference (inputs rounded through bf16 so both paths see the same data)
# ----------------------------------------------------------------------------
def _conv_bn_relu_ref(x, w, g, b, m, v, *, stride, padding, conv_bias=None, eps=1e-3):
    s = (stride,) * 3 if isinstance(stride, int) else tuple(stride)
    p = (padding,) * 3 if isinstance(padding, int) else tuple(padding)
    xb = x.astype(jnp.bfloat16).astype(jnp.float32)
    wb = w.astype(jnp.bfloat16).astype(jnp.float32)
    y = lax.conv_general_dilated(
        xb, wb, window_strides=s,
        padding=[(p[0], p[0]), (p[1], p[1]), (p[2], p[2])],
        dimension_numbers=("NCDHW", "OIDHW", "NCDHW"),
        precision=lax.Precision.HIGHEST)
    if conv_bias is not None:
        y = y + conv_bias.reshape(1, -1, 1, 1, 1)
    scale = g / jnp.sqrt(v + eps)
    shift = b - m * scale
    return jnp.maximum(y * scale.reshape(1, -1, 1, 1, 1)
                       + shift.reshape(1, -1, 1, 1, 1), 0.0)


def _bn_params(key, c):
    kg, kb, km, kv = jax.random.split(key, 4)
    g = 1.0 + 0.1 * jax.random.normal(kg, (c,), jnp.float32)
    b = 0.1 * jax.random.normal(kb, (c,), jnp.float32)
    m = 0.1 * jax.random.normal(km, (c,), jnp.float32)
    v = jnp.abs(1.0 + 0.1 * jax.random.normal(kv, (c,), jnp.float32))
    return g, b, m, v


if __name__ == "__main__":
    keys = jax.random.split(jax.random.PRNGKey(0), 14)

    # --- Test 1: pointwise BasicConv3d (how S3DG's Mixed_* blocks use it) ---
    N, C_in, D, H, W, C_out = 2, 16, 8, 16, 16, 32
    x1 = jax.random.normal(keys[0], (N, C_in, D, H, W), jnp.float32)
    w1 = 0.1 * jax.random.normal(keys[1], (C_out, C_in, 1, 1, 1), jnp.float32)
    bn1 = _bn_params(keys[2], C_out)
    out1 = jax.block_until_ready(
        basic_conv3d(x1, w1, *bn1, stride=1, padding=0))
    ref1 = _conv_bn_relu_ref(x1, w1, *bn1, stride=1, padding=0)
    assert out1.shape == (N, C_out, D, H, W), out1.shape
    assert jnp.allclose(out1, ref1, atol=1e-2, rtol=1e-2), \
        float(jnp.max(jnp.abs(out1.astype(jnp.float32) - ref1)))

    # --- Test 2: generic 3x3x3 BasicConv3d, stride 1, padding 1 ---
    N, C_in, D, H, W, C_out = 2, 4, 8, 16, 16, 8
    x2 = jax.random.normal(keys[3], (N, C_in, D, H, W), jnp.float32)
    w2 = 0.1 * jax.random.normal(keys[4], (C_out, C_in, 3, 3, 3), jnp.float32)
    bn2 = _bn_params(keys[5], C_out)
    out2 = jax.block_until_ready(
        basic_conv3d(x2, w2, *bn2, stride=1, padding=1))
    ref2 = _conv_bn_relu_ref(x2, w2, *bn2, stride=1, padding=1)
    assert out2.shape == (N, C_out, D, H, W), out2.shape
    assert jnp.allclose(out2, ref2, atol=1e-2, rtol=1e-2), \
        float(jnp.max(jnp.abs(out2.astype(jnp.float32) - ref2)))

    # --- Test 3: STConv3d (separable (1,3,3)+bias then (3,1,1)+bias), pad 1 ---
    N, C_in, D, H, W, C_mid = 2, 8, 8, 16, 16, 16
    x3 = jax.random.normal(keys[6], (N, C_in, D, H, W), jnp.float32)
    ws = 0.1 * jax.random.normal(keys[7], (C_mid, C_in, 1, 3, 3), jnp.float32)
    wt = 0.1 * jax.random.normal(keys[8], (C_mid, C_mid, 3, 1, 1), jnp.float32)
    bns = _bn_params(keys[9], C_mid)
    bnt = _bn_params(keys[10], C_mid)
    bias_s = 0.1 * jax.random.normal(keys[11], (C_mid,), jnp.float32)
    bias_t = 0.1 * jax.random.normal(keys[12], (C_mid,), jnp.float32)
    out3 = jax.block_until_ready(
        st_conv3d(x3, ws, bns, wt, bnt, stride=1, padding=1,
                  b_spatial=bias_s, b_temporal=bias_t))
    y_ref = _conv_bn_relu_ref(x3, ws, *bns, stride=(1, 1, 1),
                              padding=(0, 1, 1), conv_bias=bias_s)
    ref3 = _conv_bn_relu_ref(y_ref, wt, *bnt, stride=(1, 1, 1),
                             padding=(1, 0, 0), conv_bias=bias_t)
    assert out3.shape == (N, C_mid, D, H, W), out3.shape
    assert jnp.allclose(out3, ref3, atol=2.5e-2, rtol=2.5e-2), \
        float(jnp.max(jnp.abs(out3.astype(jnp.float32) - ref3)))

    # --- Test 4: force the multi-K (accumulator) path with a tiny max_tk ---
    out4 = jax.block_until_ready(
        basic_conv3d(x2, w2, *bn2, stride=1, padding=1, max_tk=64))
    assert jnp.allclose(out4, ref2, atol=1e-2, rtol=1e-2), \
        float(jnp.max(jnp.abs(out4.astype(jnp.float32) - ref2)))

    print("KERNEL_OK")
</pallas_src>

<mosaic_0001>
module attributes {stable_mosaic.version = 11 : i64} {
  func.func @_gemm_bn_relu_kernel_single_k(%arg0: i32, %arg1: i32, %arg2: memref<256x16xbf16, #tpu.memory_space<vmem>>, %arg3: memref<16x128xbf16, #tpu.memory_space<vmem>>, %arg4: memref<1x128xf32, #tpu.memory_space<vmem>>, %arg5: memref<256x128xbf16, #tpu.memory_space<vmem>>) attributes {dimension_semantics = [#tpu.dimension_semantics<parallel>, #tpu.dimension_semantics<parallel>], iteration_bounds = array<i64: 16, 1>, scalar_prefetch = 0 : i64, scratch_operands = 0 : i64, tpu.core_type = #tpu.core_type<tc>, window_params = [{transform_indices = @transform_0, window_bounds = array<i64: 256, 16>}, {transform_indices = @transform_1, window_bounds = array<i64: 16, 128>}, {transform_indices = @transform_2, window_bounds = array<i64: 1, 128>}, {transform_indices = @transform_3, window_bounds = array<i64: 256, 128>}]} {
    %c0 = arith.constant 0 : index
    %c0_0 = arith.constant 0 : index
    %0 = vector.load %arg2[%c0, %c0_0] : memref<256x16xbf16, #tpu.memory_space<vmem>>, vector<256x16xbf16>
    %c0_1 = arith.constant 0 : index
    %c0_2 = arith.constant 0 : index
    %1 = vector.load %arg3[%c0_1, %c0_2] : memref<16x128xbf16, #tpu.memory_space<vmem>>, vector<16x128xbf16>
    %cst = arith.constant dense<0.000000e+00> : vector<256x128xf32>
    %2 = tpu.matmul %0, %1, %cst {dimension_numbers = #tpu.dot_dimension_numbers<[1], [0], [0], [1], [0, 0, 1, 1], [], []>} : vector<256x16xbf16>, vector<16x128xbf16>, vector<256x128xf32> -> vector<256x128xf32>
    %c0_3 = arith.constant 0 : index
    %c0_4 = arith.constant 0 : index
    %3 = vector.load %arg4[%c0_3, %c0_4] : memref<1x128xf32, #tpu.memory_space<vmem>>, vector<1x128xf32>
    %4 = vector.broadcast %3 : vector<1x128xf32> to vector<256x128xf32>
    %5 = arith.addf %2, %4 : vector<256x128xf32>
    %cst_5 = arith.constant 0.000000e+00 : f32
    %6 = vector.broadcast %cst_5 : f32 to vector<256x128xf32>
    %7 = arith.maximumf %5, %6 : vector<256x128xf32>
    %8 = arith.truncf %7 : vector<256x128xf32> to vector<256x128xbf16>
    %c0_6 = arith.constant 0 : index
    %c0_7 = arith.constant 0 : index
    %9 = vector.load %arg5[%c0_6, %c0_7] : memref<256x128xbf16, #tpu.memory_space<vmem>>, vector<256x128xbf16>
    tpu.vector_store %arg5[%c0_6, %c0_7], %8 {strides = array<i32>} : memref<256x128xbf16, #tpu.memory_space<vmem>>, vector<256x128xbf16>,
    return
  }
  func.func @transform_0(%arg0: i32, %arg1: i32) -> (i32, i32) {
    %c0_i32 = arith.constant 0 : i32
    %c0_i32_0 = arith.constant 0 : i32
    return %arg0, %c0_i32 : i32, i32
  }
  func.func @transform_1(%arg0: i32, %arg1: i32) -> (i32, i32) {
    %c0_i32 = arith.constant 0 : i32
    %c0_i32_0 = arith.constant 0 : i32
    return %c0_i32, %arg1 : i32, i32
  }
  func.func @transform_2(%arg0: i32, %arg1: i32) -> (i32, i32) {
    %c0_i32 = arith.constant 0 : i32
    %c0_i32_0 = arith.constant 0 : i32
    return %c0_i32, %arg1 : i32, i32
  }
  func.func @transform_3(%arg0: i32, %arg1: i32) -> (i32, i32) {
    %c0_i32 = arith.constant 0 : i32
    return %arg0, %arg1 : i32, i32
  }
}

</mosaic_0001>

<llo_original>
// kernel: tpu_custom_call.1
$region0: #{tpu_custom_call.1}
  #allocation0 [shape = 'u32[]', space=smem, size = 0x4, offset = 0x4, fixed_abs, tag = 'smem constant byte address 0x4 - core index']
  #allocation1 [shape = 'u32[72,128]{1,0:T(1,128)}', space=vmem, size = 0x9000, scoped, tag = 'internal scratch']
  %s0 = inlined_call_operand.vmem [shape: bf16[4096,16], index: 0, kind: input, shape index: {}]
  %s1 = inlined_call_operand.vmem [shape: bf16[16,128], index: 1, kind: input, shape index: {}]
  %s2 = inlined_call_operand.vmem [shape: f32[1,128], index: 2, kind: input, shape index: {}]
  %s3 = inlined_call_operand.hbm [shape: bf16[4096,128], index: 3, kind: output, shape index: {}]
  %s4 = sld [smem:[#allocation0]]
  $region45: #{tpu_custom_call.1} parent=0
    _
  %s6 = ssub.s32 1, %s4
  %s7 = scalar_select 0, %s6, %s4
  $region1: #{tpu_custom_call.1} parent=0
    #allocation2 [shape = 'u8[131072]{0}', space=vmem, size = 0x20000, scoped, tag = 'output window, operand 0']
    #allocation3 [shape = 's32[2]{0}', space=sflag, size = 0x8, scoped, tag = 'scoped memory for tpu_custom_call.1']
    %8 = vsyncpa [#allocation3], 0
    %s9 = scalar_lea.sflag [#allocation3], 1
    %10 = vsyncpa %s9, 0
    loop: start=0, step=1, limit=18
    $region2: #{tpu_custom_call.1} parent=1 // loop_pre_header
      _
    $region3: #{tpu_custom_call.1} parent=1 // loop_header
      %s12 = sphi 0, %s16
      %p13 = scmp.ge.s32.totalorder %s12, 18
      %s19 = sphi 0, %s31
      %s20 = sphi 0, %s27
      %s21 = sphi 0, %s19
      %s22 = sphi 0, %s20
      %s23 = sphi 0, %s21
      %s24 = sphi 0, %s22
      %s34 = sphi 0, %s36
      %s37 = sphi 0, %s34
      %s38 = sphi 0, %s37
      %s54 = sphi 0, %s38
      %s60 = sphi 0, %s62
      %s63 = sphi 0, %s60
      %s64 = sphi 0, %s63
      %s80 = sphi 0, %s64
      %s86 = sphi 0, %s88
      %s89 = sphi 0, %s86
      %s90 = sphi 0, %s89
      %s106 = sphi 0, %s90
      %s114 = sphi 0, %s116
      %s117 = sphi 0, %s114
      %s118 = sphi 0, %s117
      %s134 = sphi 0, %s118
    $region4: #{tpu_custom_call.1} parent=1 // loop_header_branch
      %15 = sbr.rel (%p13) target = $region8
    $region5: #{tpu_custom_call.1} parent=1 // loop_body
      %s17 = ssub.s32 %s12, 1
      %s18 = ssub.s32 %s12, 2
      %s25 = sadd.s32 1, %s20
      %p26 = scmp.ge.s32.totalorder %s25, 1
      %s27 = scalar_select %p26, 0, %s25
      %s28 = sadd.s32 1, %s19
      %s29 = scalar_select %p26, %s28, %s19
      %p30 = scmp.ge.s32.totalorder %s29, 16
      %s31 = scalar_select %p30, 0, %s29
      %s32 = ssub.s32 %s19, %s31
      %p33 = scmp.eq.s32.totalorder %s32, 0
      %s35 = sadd.s32 %s34, 1
      %s36 = scalar_select %p33, %s34, %s35
      %p39 = pneg %p33
      %p40 = scmp.eq.s32.totalorder %s12, 15
      %p41 = por %p39, %p40
      %p42 = scmp.ne.s32.totalorder %s34, %s37
      %p43 = scmp.eq.s32.totalorder %s12, 0
      %p44 = por %p42, %p43
      %p45 = scmp.ne.s32.totalorder %s34, %s37
      %p46 = scmp.eq.s32.totalorder %s17, 15
      %p47 = por %p45, %p46
      %p48 = scmp.ne.s32.totalorder %s37, %s38
      %p49 = scmp.eq.s32.totalorder %s17, 0
      %p50 = por %p48, %p49
      %p51 = scmp.ne.s32.totalorder %s37, %s38
      %p52 = scmp.eq.s32.totalorder %s18, 15
      %p53 = por %p51, %p52
      %p55 = scmp.ne.s32.totalorder %s38, %s54
      %p56 = scmp.eq.s32.totalorder %s18, 0
      %p57 = por %p55, %p56
      %s58 = ssub.s32 %s20, %s27
      %p59 = scmp.eq.s32.totalorder %s58, 0
      %s61 = sadd.s32 %s60, 1
      %s62 = scalar_select %p59, %s60, %s61
      %p65 = pneg %p59
      %p66 = scmp.eq.s32.totalorder %s12, 15
      %p67 = por %p65, %p66
      %p68 = scmp.ne.s32.totalorder %s60, %s63
      %p69 = scmp.eq.s32.totalorder %s12, 0
      %p70 = por %p68, %p69
      %p71 = scmp.ne.s32.totalorder %s60, %s63
      %p72 = scmp.eq.s32.totalorder %s17, 15
      %p73 = por %p71, %p72
      %p74 = scmp.ne.s32.totalorder %s63, %s64
      %p75 = scmp.eq.s32.totalorder %s17, 0
      %p76 = por %p74, %p75
      %p77 = scmp.ne.s32.totalorder %s63, %s64
      %p78 = scmp.eq.s32.totalorder %s18, 15
      %p79 = por %p77, %p78
      %p81 = scmp.ne.s32.totalorder %s64, %s80
      %p82 = scmp.eq.s32.totalorder %s18, 0
      %p83 = por %p81, %p82
      %s84 = ssub.s32 %s20, %s27
      %p85 = scmp.eq.s32.totalorder %s84, 0
      %s87 = sadd.s32 %s86, 1
      %s88 = scalar_select %p85, %s86, %s87
      %p91 = pneg %p85
      %p92 = scmp.eq.s32.totalorder %s12, 15
      %p93 = por %p91, %p92
      %p94 = scmp.ne.s32.totalorder %s86, %s89
      %p95 = scmp.eq.s32.totalorder %s12, 0
      %p96 = por %p94, %p95
      %p97 = scmp.ne.s32.totalorder %s86, %s89
      %p98 = scmp.eq.s32.totalorder %s17, 15
      %p99 = por %p97, %p98
      %p100 = scmp.ne.s32.totalorder %s89, %s90
      %p101 = scmp.eq.s32.totalorder %s17, 0
      %p102 = por %p100, %p101
      %p103 = scmp.ne.s32.totalorder %s89, %s90
      %p104 = scmp.eq.s32.totalorder %s18, 15
      %p105 = por %p103, %p104
      %p107 = scmp.ne.s32.totalorder %s90, %s106
      %p108 = scmp.eq.s32.totalorder %s18, 0
      %p109 = por %p107, %p108
      %s110 = ssub.s32 %s19, %s31
      %s111 = ssub.s32 %s20, %s27
      %s112 = sor.u32 %s110, %s111
      %p113 = scmp.eq.s32.totalorder %s112, 0
      %s115 = sadd.s32 %s114, 1
      %s116 = scalar_select %p113, %s114, %s115
      %p119 = pneg %p113
      %p120 = scmp.eq.s32.totalorder %s12, 15
      %p121 = por %p119, %p120
      %p122 = scmp.ne.s32.totalorder %s114, %s117
      %p123 = scmp.eq.s32.totalorder %s12, 0
      %p124 = por %p122, %p123
      %p125 = scmp.ne.s32.totalorder %s114, %s117
      %p126 = scmp.eq.s32.totalorder %s17, 15
      %p127 = por %p125, %p126
      %p128 = scmp.ne.s32.totalorder %s117, %s118
      %p129 = scmp.eq.s32.totalorder %s17, 0
      %p130 = por %p128, %p129
      %p131 = scmp.ne.s32.totalorder %s117, %s118
      %p132 = scmp.eq.s32.totalorder %s18, 15
      %p133 = por %p131, %p132
      %p135 = scmp.ne.s32.totalorder %s118, %s134
      %p136 = scmp.eq.s32.totalorder %s18, 0
      %p137 = por %p135, %p136
      %p138 = scmp.le.s32.totalorder 1, %s12
      %p139 = scmp.lt.s32.totalorder %s12, 17
      %p140 = pnand %p138, %p139
      %p141 = pneg %p140
      // Predicated region
      $region9: #{tpu_custom_call.1} parent=5 // pred_check
        _
      $region10: #{tpu_custom_call.1} parent=5 // pred_check_branch
        %143 = sbr.rel (%p140) target = $region12
      $region11: #{tpu_custom_call.1} parent=5 // pred_region
        %s144 = ssub.s32 %s12, 1
        // Predicated region
        $region13: #{tpu_custom_call.1} parent=11 // pred_check
          %p145 = pneg %p76
        $region14: #{tpu_custom_call.1} parent=11 // pred_check_branch
          %147 = sbr.rel (%p145) target = $region16
        $region15: #{tpu_custom_call.1} parent=11 // pred_region
          %p148 = scmp.lt.s32.totalorder %s22, 0
          %s149 = scalar_select %p148, %s22, 0
          %s150 = smul.addr %s149, 4
          %s151 = scalar_lea.vmem %s1, %s150
        $region16: #{tpu_custom_call.1} parent=11 // pred_fallthru
          _
        // Predicated region
        $region17: #{tpu_custom_call.1} parent=11 // pred_check
          %p152 = pneg %p102
        $region18: #{tpu_custom_call.1} parent=11 // pred_check_branch
          %154 = sbr.rel (%p152) target = $region20
        $region19: #{tpu_custom_call.1} parent=11 // pred_region
          %p155 = scmp.lt.s32.totalorder %s22, 0
          %s156 = scalar_select %p155, %s22, 0
          %s157 = scalar_lea.vmem %s2, %s156
        $region20: #{tpu_custom_call.1} parent=11 // pred_fallthru
          _
      $region12: #{tpu_custom_call.1} parent=5 // pred_fallthru
        _
      %p158 = scmp.lt.s32.totalorder %s12, 16
      // Predicated region
      $region21: #{tpu_custom_call.1} parent=5 // pred_check
        %p159 = pneg %p158
      $region22: #{tpu_custom_call.1} parent=5 // pred_check_branch
        %161 = sbr.rel (%p159) target = $region24
      $region23: #{tpu_custom_call.1} parent=5 // pred_region
        // Predicated region
        $region25: #{tpu_custom_call.1} parent=23 // pred_check
          %p162 = pneg %p44
        $region26: #{tpu_custom_call.1} parent=23 // pred_check_branch
          %164 = sbr.rel (%p162) target = $region28
        $region27: #{tpu_custom_call.1} parent=23 // pred_region
          %s165 = smul.u32 32, %s19
          %p166 = scmp.lt.s32.totalorder %s165, 511
          %s167 = scalar_select %p166, %s165, 511
          %s168 = smul.addr %s167, 4
          %s169 = scalar_lea.vmem %s0, %s168
          %s170 = smul.u32 32, %s19
        $region28: #{tpu_custom_call.1} parent=23 // pred_fallthru
          _
      $region24: #{tpu_custom_call.1} parent=5 // pred_fallthru
        _
      %p171 = scmp.le.s32.totalorder 1, %s12
      %p172 = scmp.lt.s32.totalorder %s12, 17
      %p173 = pnand %p171, %p172
      %p174 = pneg %p173
      // Predicated region
      $region29: #{tpu_custom_call.1} parent=5 // pred_check
        _
      $region30: #{tpu_custom_call.1} parent=5 // pred_check_branch
        %176 = sbr.rel (%p173) target = $region32
      $region31: #{tpu_custom_call.1} parent=5 // pred_region
        %s177 = ssub.s32 %s12, 1
        %s178 = smul.u32 32, %s21
        %p179 = scmp.lt.s32.totalorder %s178, 511
        %s180 = scalar_select %p179, %s178, 511
        %s181 = smul.addr %s180, 4
        %s182 = scalar_lea.vmem %s0, %s181
        %p183 = pneg %p50
        %p184 = pneg %p47
        %p185 = scmp.lt.s32.totalorder %s22, 0
        %s186 = scalar_select %p185, %s22, 0
        %s187 = smul.addr %s186, 4
        %s188 = scalar_lea.vmem %s1, %s187
        %p189 = pneg %p76
        %p190 = pneg %p73
        %p191 = scmp.lt.s32.totalorder %s22, 0
        %s192 = scalar_select %p191, %s22, 0
        %s193 = scalar_lea.vmem %s2, %s192
        %p194 = pneg %p102
        %p195 = pneg %p99
        %p196 = pneg %p130
        %p197 = pneg %p127
        %s198 = sand.u32 %s117, 1
        %s199 = scalar_lea.sflag [#allocation3], %s198
        %s200 = sand.u32 %s117, 1
        %s201 = smul.addr %s200, 128
        %s202 = scalar_lea.vmem [#allocation2], %s201
        %s203 = smul.u32 32, %s21
        %p204 = scmp.lt.s32.totalorder %s203, 511
        %s205 = scalar_select %p204, %s203, 511
        %s206 = smul.addr %s205, 4
        %s207 = scalar_lea.vmem %s0, %s206
        %s208 = smul.u32 32, %s21
        %p209 = scmp.lt.s32.totalorder %s22, 0
        %s210 = scalar_select %p209, %s22, 0
        %s211 = smul.addr %s210, 4
        %s212 = scalar_lea.vmem %s1, %s211
        %p213 = scmp.lt.s32.totalorder %s22, 0
        %s214 = scalar_select %p213, %s22, 0
        %s215 = scalar_lea.vmem %s2, %s214
        %s216 = smul.u32 32, %s21
        %v218 = vld [vmem:[%s207] sm:$0xf]
        %v219 = vld [vmem:[%s207 + $0x4] sm:$0xf]
        %v220 = vld [vmem:[%s207 + $0x8] sm:$0xf]
        %v221 = vld [vmem:[%s207 + $0xc] sm:$0xf]
        %v222 = vld [vmem:[%s207 + $0x10] sm:$0xf]
        %v223 = vld [vmem:[%s207 + $0x14] sm:$0xf]
        %v224 = vld [vmem:[%s207 + $0x18] sm:$0xf]
        %v225 = vld [vmem:[%s207 + $0x1c] sm:$0xf]
        %v226 = vld [vmem:[%s207 + $0x20] sm:$0xf]
        %v227 = vld [vmem:[%s207 + $0x24] sm:$0xf]
        %v228 = vld [vmem:[%s207 + $0x28] sm:$0xf]
        %v229 = vld [vmem:[%s207 + $0x2c] sm:$0xf]
        %v230 = vld [vmem:[%s207 + $0x30] sm:$0xf]
        %v231 = vld [vmem:[%s207 + $0x34] sm:$0xf]
        %v232 = vld [vmem:[%s207 + $0x38] sm:$0xf]
        %v233 = vld [vmem:[%s207 + $0x3c] sm:$0xf]
        %v234 = vld [vmem:[%s207 + $0x40] sm:$0xf]
        %v235 = vld [vmem:[%s207 + $0x44] sm:$0xf]
        %v236 = vld [vmem:[%s207 + $0x48] sm:$0xf]
        %v237 = vld [vmem:[%s207 + $0x4c] sm:$0xf]
        %v238 = vld [vmem:[%s207 + $0x50] sm:$0xf]
        %v239 = vld [vmem:[%s207 + $0x54] sm:$0xf]
        %v240 = vld [vmem:[%s207 + $0x58] sm:$0xf]
        %v241 = vld [vmem:[%s207 + $0x5c] sm:$0xf]
        %v242 = vld [vmem:[%s207 + $0x60] sm:$0xf]
        %v243 = vld [vmem:[%s207 + $0x64] sm:$0xf]
        %v244 = vld [vmem:[%s207 + $0x68] sm:$0xf]
        %v245 = vld [vmem:[%s207 + $0x6c] sm:$0xf]
        %v246 = vld [vmem:[%s207 + $0x70] sm:$0xf]
        %v247 = vld [vmem:[%s207 + $0x74] sm:$0xf]
        %v248 = vld [vmem:[%s207 + $0x78] sm:$0xf]
        %v249 = vld [vmem:[%s207 + $0x7c] sm:$0xf]
        %v250 = vld [vmem:[%s212] sm:$0xf]
        %v251 = vld [vmem:[%s212 + $0x4] sm:$0xf]
        %v252 = vld [vmem:[%s215] sm:$0x1]
        %v254 = vperm.slane %v252, 0
        %v288 = vunpack.c.l.b16 %v218
        %v289 = vunpack.c.l.b16 %v219
        %v290 = vunpack.c.l.b16 %v220
        %v291 = vunpack.c.l.b16 %v221
        %v292 = vunpack.c.l.b16 %v222
        %v293 = vunpack.c.l.b16 %v223
        %v294 = vunpack.c.l.b16 %v224
        %v295 = vunpack.c.l.b16 %v225
        %v296 = vunpack.c.l.b16 %v226
        %v297 = vunpack.c.l.b16 %v227
        %v298 = vunpack.c.l.b16 %v228
        %v299 = vunpack.c.l.b16 %v229
        %v300 = vunpack.c.l.b16 %v230
        %v301 = vunpack.c.l.b16 %v231
        %v302 = vunpack.c.l.b16 %v232
        %v303 = vunpack.c.l.b16 %v233
        %v304 = vunpack.c.l.b16 %v234
        %v305 = vunpack.c.l.b16 %v235
        %v306 = vunpack.c.l.b16 %v236
        %v307 = vunpack.c.l.b16 %v237
        %v308 = vunpack.c.l.b16 %v238
        %v309 = vunpack.c.l.b16 %v239
        %v310 = vunpack.c.l.b16 %v240
        %v311 = vunpack.c.l.b16 %v241
        %v312 = vunpack.c.l.b16 %v242
        %v313 = vunpack.c.l.b16 %v243
        %v314 = vunpack.c.l.b16 %v244
        %v315 = vunpack.c.l.b16 %v245
        %v316 = vunpack.c.l.b16 %v246
        %v317 = vunpack.c.l.b16 %v247
        %v318 = vunpack.c.l.b16 %v248
        %v319 = vunpack.c.l.b16 %v249
        %v320 = vpack.c.b16 %v289, %v288
        %v321 = vpack.c.b16 %v291, %v290
        %v322 = vpack.c.b16 %v293, %v292
        %v323 = vpack.c.b16 %v295, %v294
        %v324 = vpack.c.b16 %v297, %v296
        %v325 = vpack.c.b16 %v299, %v298
        %v326 = vpack.c.b16 %v301, %v300
        %v327 = vpack.c.b16 %v303, %v302
        %v328 = vpack.c.b16 %v305, %v304
        %v329 = vpack.c.b16 %v307, %v306
        %v330 = vpack.c.b16 %v309, %v308
        %v331 = vpack.c.b16 %v311, %v310
        %v332 = vpack.c.b16 %v313, %v312
        %v333 = vpack.c.b16 %v315, %v314
        %v334 = vpack.c.b16 %v317, %v316
        %v335 = vpack.c.b16 %v319, %v318
        %v338 = vunpack.c.l.b16 %v250
        %v339 = vunpack.c.l.b16 %v251
        %v340 = vpack.c.b16 %v339, %v338
        %vm342 = vcmask 130048
        %v344 = vsel %vm342, %v320, 0
        %v347 = vsel %vm342, %v321, 0
        %v350 = vsel %vm342, %v322, 0
        %v353 = vsel %vm342, %v323, 0
        %v356 = vsel %vm342, %v324, 0
        %v359 = vsel %vm342, %v325, 0
        %v362 = vsel %vm342, %v326, 0
        %v365 = vsel %vm342, %v327, 0
        %v368 = vsel %vm342, %v328, 0
        %v371 = vsel %vm342, %v329, 0
        %v374 = vsel %vm342, %v330, 0
        %v377 = vsel %vm342, %v331, 0
        %v380 = vsel %vm342, %v332, 0
        %v383 = vsel %vm342, %v333, 0
        %v386 = vsel %vm342, %v334, 0
        %v389 = vsel %vm342, %v335, 0
        %391 = vmatpush.bf16.msra.mxu0 0
        %392 = vmatpush.bf16.msra.mxu0 0
        %393 = vmatpush.bf16.msra.mxu0 0
        %394 = vmatpush.bf16.msra.mxu0 0
        %395 = vmatpush.bf16.msra.mxu0 0
        %396 = vmatpush.bf16.msra.mxu0 0
        %397 = vmatpush.bf16.msra.mxu0 0
        %398 = vmatpush.bf16.msra.mxu0 %v340
        %399 = vmatmul.bf16.gmra.mxu0 %v344
        %v400 = vpop.f32.mrf.mxu0
        %v401 = vadd.f32 %v254, %v400
        %v402 = vpop.f32.mrf.mxu0
        %v403 = vadd.f32 %v254, %v402
        %404 = vmatmul.bf16.gmra.mxu0 %v347
        %v405 = vpop.f32.mrf.mxu0
        %v406 = vadd.f32 %v254, %v405
        %v407 = vpop.f32.mrf.mxu0
        %v408 = vadd.f32 %v254, %v407
        %409 = vmatmul.bf16.gmra.mxu0 %v350
        %v410 = vpop.f32.mrf.mxu0
        %v411 = vadd.f32 %v254, %v410
        %v412 = vpop.f32.mrf.mxu0
        %v413 = vadd.f32 %v254, %v412
        %414 = vmatmul.bf16.gmra.mxu0 %v353
        %v415 = vpop.f32.mrf.mxu0
        %v416 = vadd.f32 %v254, %v415
        %v417 = vpop.f32.mrf.mxu0
        %v418 = vadd.f32 %v254, %v417
        %419 = vmatmul.bf16.gmra.mxu0 %v356
        %v420 = vpop.f32.mrf.mxu0
        %v421 = vadd.f32 %v254, %v420
        %v422 = vpop.f32.mrf.mxu0
        %v423 = vadd.f32 %v254, %v422
        %424 = vmatmul.bf16.gmra.mxu0 %v359
        %v425 = vpop.f32.mrf.mxu0
        %v426 = vadd.f32 %v254, %v425
        %v427 = vpop.f32.mrf.mxu0
        %v428 = vadd.f32 %v254, %v427
        %429 = vmatmul.bf16.gmra.mxu0 %v362
        %v430 = vpop.f32.mrf.mxu0
        %v431 = vadd.f32 %v254, %v430
        %v432 = vpop.f32.mrf.mxu0
        %v433 = vadd.f32 %v254, %v432
        %434 = vmatmul.bf16.gmra.mxu0 %v365
        %v435 = vpop.f32.mrf.mxu0
        %v436 = vadd.f32 %v254, %v435
        %v437 = vpop.f32.mrf.mxu0
        %v438 = vadd.f32 %v254, %v437
        %439 = vmatmul.bf16.gmra.mxu0 %v368
        %v440 = vpop.f32.mrf.mxu0
        %v441 = vadd.f32 %v254, %v440
        %v442 = vpop.f32.mrf.mxu0
        %v443 = vadd.f32 %v254, %v442
        %444 = vmatmul.bf16.gmra.mxu0 %v371
        %v445 = vpop.f32.mrf.mxu0
        %v446 = vadd.f32 %v254, %v445
        %v447 = vpop.f32.mrf.mxu0
        %v448 = vadd.f32 %v254, %v447
        %449 = vmatmul.bf16.gmra.mxu0 %v374
        %v450 = vpop.f32.mrf.mxu0
        %v451 = vadd.f32 %v254, %v450
        %v452 = vpop.f32.mrf.mxu0
        %v453 = vadd.f32 %v254, %v452
        %454 = vmatmul.bf16.gmra.mxu0 %v377
        %v455 = vpop.f32.mrf.mxu0
        %v456 = vadd.f32 %v254, %v455
        %v457 = vpop.f32.mrf.mxu0
        %v458 = vadd.f32 %v254, %v457
        %459 = vmatmul.bf16.gmra.mxu0 %v380
        %v460 = vpop.f32.mrf.mxu0
        %v461 = vadd.f32 %v254, %v460
        %v462 = vpop.f32.mrf.mxu0
        %v463 = vadd.f32 %v254, %v462
        %464 = vmatmul.bf16.gmra.mxu0 %v383
        %v465 = vpop.f32.mrf.mxu0
        %v466 = vadd.f32 %v254, %v465
        %v467 = vpop.f32.mrf.mxu0
        %v468 = vadd.f32 %v254, %v467
        %469 = vmatmul.bf16.gmra.mxu0 %v386
        %v470 = vpop.f32.mrf.mxu0
        %v471 = vadd.f32 %v254, %v470
        %v472 = vpop.f32.mrf.mxu0
        %v473 = vadd.f32 %v254, %v472
        %474 = vmatmul.bf16.gmra.mxu0 %v389
        %v475 = vpop.f32.mrf.mxu0
        %v476 = vadd.f32 %v254, %v475
        %v477 = vpop.f32.mrf.mxu0
        %v478 = vadd.f32 %v254, %v477
        %479 = vdwg.mxu0
        %v480 = vmax.f32 %v401, 0.0
        %v481 = vmax.f32 %v403, 0.0
        %v482 = vmax.f32 %v406, 0.0
        %v483 = vmax.f32 %v408, 0.0
        %v484 = vmax.f32 %v411, 0.0
        %v485 = vmax.f32 %v413, 0.0
        %v486 = vmax.f32 %v416, 0.0
        %v487 = vmax.f32 %v418, 0.0
        %v488 = vmax.f32 %v421, 0.0
        %v489 = vmax.f32 %v423, 0.0
        %v490 = vmax.f32 %v426, 0.0
        %v491 = vmax.f32 %v428, 0.0
        %v492 = vmax.f32 %v431, 0.0
        %v493 = vmax.f32 %v433, 0.0
        %v494 = vmax.f32 %v436, 0.0
        %v495 = vmax.f32 %v438, 0.0
        %v496 = vmax.f32 %v441, 0.0
        %v497 = vmax.f32 %v443, 0.0
        %v498 = vmax.f32 %v446, 0.0
        %v499 = vmax.f32 %v448, 0.0
        %v500 = vmax.f32 %v451, 0.0
        %v501 = vmax.f32 %v453, 0.0
        %v502 = vmax.f32 %v456, 0.0
        %v503 = vmax.f32 %v458, 0.0
        %v504 = vmax.f32 %v461, 0.0
        %v505 = vmax.f32 %v463, 0.0
        %v506 = vmax.f32 %v466, 0.0
        %v507 = vmax.f32 %v468, 0.0
        %v508 = vmax.f32 %v471, 0.0
        %v509 = vmax.f32 %v473, 0.0
        %v510 = vmax.f32 %v476, 0.0
        %v511 = vmax.f32 %v478, 0.0
        %v512 = vpack.c.bf16 %v480, %v480
        %v513 = vpack.c.bf16 %v481, %v481
        %v514 = vpack.c.bf16 %v482, %v482
        %v515 = vpack.c.bf16 %v483, %v483
        %v516 = vpack.c.bf16 %v484, %v484
        %v517 = vpack.c.bf16 %v485, %v485
        %v518 = vpack.c.bf16 %v486, %v486
        %v519 = vpack.c.bf16 %v487, %v487
        %v520 = vpack.c.bf16 %v488, %v488
        %v521 = vpack.c.bf16 %v489, %v489
        %v522 = vpack.c.bf16 %v490, %v490
        %v523 = vpack.c.bf16 %v491, %v491
        %v524 = vpack.c.bf16 %v492, %v492
        %v525 = vpack.c.bf16 %v493, %v493
        %v526 = vpack.c.bf16 %v494, %v494
        %v527 = vpack.c.bf16 %v495, %v495
        %v528 = vpack.c.bf16 %v496, %v496
        %v529 = vpack.c.bf16 %v497, %v497
        %v530 = vpack.c.bf16 %v498, %v498
        %v531 = vpack.c.bf16 %v499, %v499
        %v532 = vpack.c.bf16 %v500, %v500
        %v533 = vpack.c.bf16 %v501, %v501
        %v534 = vpack.c.bf16 %v502, %v502
        %v535 = vpack.c.bf16 %v503, %v503
        %v536 = vpack.c.bf16 %v504, %v504
        %v537 = vpack.c.bf16 %v505, %v505
        %v538 = vpack.c.bf16 %v506, %v506
        %v539 = vpack.c.bf16 %v507, %v507
        %v540 = vpack.c.bf16 %v508, %v508
        %v541 = vpack.c.bf16 %v509, %v509
        %v542 = vpack.c.bf16 %v510, %v510
        %v543 = vpack.c.bf16 %v511, %v511
        %544 = vst [vmem:[%s202] sm:$0xf] %v512
        %545 = vst [vmem:[%s202 + $0x4] sm:$0xf] %v513
        %546 = vst [vmem:[%s202 + $0x8] sm:$0xf] %v514
        %547 = vst [vmem:[%s202 + $0xc] sm:$0xf] %v515
        %548 = vst [vmem:[%s202 + $0x10] sm:$0xf] %v516
        %549 = vst [vmem:[%s202 + $0x14] sm:$0xf] %v517
        %550 = vst [vmem:[%s202 + $0x18] sm:$0xf] %v518
        %551 = vst [vmem:[%s202 + $0x1c] sm:$0xf] %v519
        %552 = vst [vmem:[%s202 + $0x20] sm:$0xf] %v520
        %553 = vst [vmem:[%s202 + $0x24] sm:$0xf] %v521
        %554 = vst [vmem:[%s202 + $0x28] sm:$0xf] %v522
        %555 = vst [vmem:[%s202 + $0x2c] sm:$0xf] %v523
        %556 = vst [vmem:[%s202 + $0x30] sm:$0xf] %v524
        %557 = vst [vmem:[%s202 + $0x34] sm:$0xf] %v525
        %558 = vst [vmem:[%s202 + $0x38] sm:$0xf] %v526
        %559 = vst [vmem:[%s202 + $0x3c] sm:$0xf] %v527
        %560 = vst [vmem:[%s202 + $0x40] sm:$0xf] %v528
        %561 = vst [vmem:[%s202 + $0x44] sm:$0xf] %v529
        %562 = vst [vmem:[%s202 + $0x48] sm:$0xf] %v530
        %563 = vst [vmem:[%s202 + $0x4c] sm:$0xf] %v531
        %564 = vst [vmem:[%s202 + $0x50] sm:$0xf] %v532
        %565 = vst [vmem:[%s202 + $0x54] sm:$0xf] %v533
        %566 = vst [vmem:[%s202 + $0x58] sm:$0xf] %v534
        %567 = vst [vmem:[%s202 + $0x5c] sm:$0xf] %v535
        %568 = vst [vmem:[%s202 + $0x60] sm:$0xf] %v536
        %569 = vst [vmem:[%s202 + $0x64] sm:$0xf] %v537
        %570 = vst [vmem:[%s202 + $0x68] sm:$0xf] %v538
        %571 = vst [vmem:[%s202 + $0x6c] sm:$0xf] %v539
        %572 = vst [vmem:[%s202 + $0x70] sm:$0xf] %v540
        %573 = vst [vmem:[%s202 + $0x74] sm:$0xf] %v541
        %574 = vst [vmem:[%s202 + $0x78] sm:$0xf] %v542
        %575 = vst [vmem:[%s202 + $0x7c] sm:$0xf] %v543
        %s576 = sand.u32 %s117, 1
        %s577 = scalar_lea.sflag [#allocation3], %s576
        %s578 = sand.u32 %s117, 1
        %s579 = smul.addr %s578, 128
        %s580 = scalar_lea.vmem [#allocation2], %s579
        // Predicated region
        $region33: #{tpu_custom_call.1} parent=31 // pred_check
          %p581 = pneg %p127
        $region34: #{tpu_custom_call.1} parent=31 // pred_check_branch
          %583 = sbr.rel (%p581) target = $region36
        $region35: #{tpu_custom_call.1} parent=31 // pred_region
          %s584 = smul.u32 32, %s21
          %586 = vsyncadd %s577, 0
          %s587 = sadd.s32 %s22, %s584
          %s588 = smul.addr %s587, 4
          %s589 = scalar_lea.hbm %s3, %s588
          %s590 = sshll.u32 %s580, 4
          %s591 = int_to_ptr.vmem [resolvable:$true] %s590
          %s592 = sshll.u32 %s589, 4
          %s593 = int_to_ptr.hbm [resolvable:$true] %s592
          %598 = dma.vmem_to_hbm [thread:$0]  %s591, 2048, %s593, %s577, 64, 64, 4
        $region36: #{tpu_custom_call.1} parent=31 // pred_fallthru
          _
      $region32: #{tpu_custom_call.1} parent=5 // pred_fallthru
        _
      %p599 = scmp.le.s32.totalorder 2, %s12
      // Predicated region
      $region37: #{tpu_custom_call.1} parent=5 // pred_check
        %p600 = pneg %p599
      $region38: #{tpu_custom_call.1} parent=5 // pred_check_branch
        %602 = sbr.rel (%p600) target = $region40
      $region39: #{tpu_custom_call.1} parent=5 // pred_region
        %s603 = ssub.s32 %s12, 2
        // Predicated region
        $region41: #{tpu_custom_call.1} parent=39 // pred_check
          %p604 = pneg %p133
        $region42: #{tpu_custom_call.1} parent=39 // pred_check_branch
          %606 = sbr.rel (%p604) target = $region44
        $region43: #{tpu_custom_call.1} parent=39 // pred_region
          %s607 = sand.u32 %s118, 1
          %s608 = scalar_lea.sflag [#allocation3], %s607
          %s609 = sand.u32 %s118, 1
          %s610 = smul.addr %s609, 128
          %s611 = scalar_lea.vmem [#allocation2], %s610
          %613 = dma.done %s608, 2048
        $region44: #{tpu_custom_call.1} parent=39 // pred_fallthru
          _
      $region40: #{tpu_custom_call.1} parent=5 // pred_fallthru
        _
    $region6: #{tpu_custom_call.1} parent=1 // loop_footer
      %s16 = sadd.s32 1, %s12
    $region7: #{tpu_custom_call.1} parent=1 // loop_footer_branch
      %11 = sbr.rel target = $region3
    $region8: #{tpu_custom_call.1} parent=1 // loop_exit
      _
    %614 = vsyncpa [#allocation3], 1
    %s615 = scalar_lea.sflag [#allocation3], 1
    %616 = vsyncpa %s615, 1

</llo_original>
